<compile_context>
chip_gen: v6e
topology: v6e:2x2x1
jax: 0.10.0
libtpu: 0.0.40
codegen_flags: <defaults>
</compile_context>

<pallas_src>
import functools

import jax
import jax.numpy as jnp
from jax.experimental import pallas as pl
from jax.experimental.pallas import tpu as pltpu

LANE = 128      # TPU lane width: every feature dim is padded to this
SUBLANE = 8     # f32 sublane granularity: batch tiles are multiples of this


def dqn_mlp_kernel(x_ref, w_ref, b_ref, o_ref):
    """Fused MLP on lane-dense padded operands.

    x_ref: (bt, 128)       padded activation tile (batch rows on sublanes)
    w_ref: (4, 128, 128)   packed, pre-transposed (in,out), zero-padded weights
    b_ref: (8, 128)        packed, zero-padded biases (rows 0..3 used)
    o_ref: (bt, 128)       padded output tile
    """
    h = x_ref[...]
    h = jnp.maximum(
        jnp.dot(h, w_ref[0], preferred_element_type=jnp.float32) + b_ref[0], 0.0)
    h = jnp.maximum(
        jnp.dot(h, w_ref[1], preferred_element_type=jnp.float32) + b_ref[1], 0.0)
    h = jnp.maximum(
        jnp.dot(h, w_ref[2], preferred_element_type=jnp.float32) + b_ref[2], 0.0)
    out = jnp.dot(h, w_ref[3], preferred_element_type=jnp.float32) + b_ref[3]
    o_ref[...] = out.astype(o_ref.dtype)


def prepare_params(params):
    """One-time prep: transpose PyTorch (out,in) -> (in,out), zero-pad every
    layer to (128,128), and pack weights/biases into two slabs."""
    ws, bs = [], []
    for i in range(1, 5):
        w = params[f"w{i}"]            # (out_f, in_f) PyTorch nn.Linear layout
        b = params[f"b{i}"]            # (out_f,)
        out_f, in_f = w.shape
        assert in_f <= LANE and out_f <= LANE, "layer dims must fit one lane tile"
        wt = jnp.zeros((LANE, LANE), jnp.float32).at[:in_f, :out_f].set(w.T)
        bt = jnp.zeros((LANE,), jnp.float32).at[:out_f].set(b)
        ws.append(wt)
        bs.append(bt)
    w_packed = jnp.stack(ws, axis=0)                                   # (4,128,128)
    b_packed = (jnp.zeros((SUBLANE, LANE), jnp.float32)
                .at[:4, :].set(jnp.stack(bs, axis=0)))                 # (8,128)
    return w_packed, b_packed


@functools.partial(jax.jit, static_argnames=("actions_size",))
def dqn_forward(x, w_packed, b_packed, *, actions_size):
    """x: (B, state_size) f32. Returns (B, actions_size) f32."""
    B, state_size = x.shape
    # Batch tile: 128 rows for large batches, else round B up to a sublane multiple.
    bt = 128 if B >= 128 else ((B + SUBLANE - 1) // SUBLANE) * SUBLANE
    B_pad = ((B + bt - 1) // bt) * bt

    # Lane-dense, zero-padded activations (zero cols * zero-padded W rows = 0).
    x_pad = jnp.zeros((B_pad, LANE), jnp.float32).at[:B, :state_size].set(x)

    out_pad = pl.pallas_call(
        dqn_mlp_kernel,
        out_shape=jax.ShapeDtypeStruct((B_pad, LANE), jnp.float32),
        grid=(B_pad // bt,),
        in_specs=[
            pl.BlockSpec((bt, LANE), lambda i: (i, 0)),           # activations
            pl.BlockSpec((4, LANE, LANE), lambda i: (0, 0, 0)),   # weights (resident)
            pl.BlockSpec((SUBLANE, LANE), lambda i: (0, 0)),      # biases (resident)
        ],
        out_specs=pl.BlockSpec((bt, LANE), lambda i: (i, 0)),
        compiler_params=pltpu.CompilerParams(
            dimension_semantics=("parallel",)),
    )(x_pad, w_packed, b_packed)

    return out_pad[:B, :actions_size]


def init_params(key, state_size, actions_size, hidden_size=24):
    """Deterministic init mimicking nn.Linear default U(-1/sqrt(fan_in), 1/sqrt(fan_in))."""
    dims = [(hidden_size, state_size),
            (hidden_size, hidden_size),
            (hidden_size, hidden_size),
            (actions_size, hidden_size)]
    params = {}
    for i, (out_f, in_f) in enumerate(dims, start=1):
        key, kw, kb = jax.random.split(key, 3)
        bound = 1.0 / jnp.sqrt(jnp.float32(in_f))
        params[f"w{i}"] = jax.random.uniform(
            kw, (out_f, in_f), jnp.float32, minval=-bound, maxval=bound)
        params[f"b{i}"] = jax.random.uniform(
            kb, (out_f,), jnp.float32, minval=-bound, maxval=bound)
    return params


if __name__ == "__main__":
    state_size = 4
    actions_size = 2
    hidden_size = 24
    batch = 2

    key = jax.random.PRNGKey(0)
    key, kx = jax.random.split(key)
    x = jax.random.normal(kx, (batch, state_size), dtype=jnp.float32)

    params = init_params(key, state_size, actions_size, hidden_size)

    # One-time parameter packing (hoisted out of the per-call path).
    w_packed, b_packed = prepare_params(params)
    w_packed, b_packed = jax.block_until_ready((w_packed, b_packed))

    out = dqn_forward(x, w_packed, b_packed, actions_size=actions_size)
    out = jax.block_until_ready(out)

    # Pure-JAX reference of the same math (PyTorch convention y = x W^T + b).
    def ref(x, p):
        h = jnp.maximum(x @ p["w1"].T + p["b1"], 0.0)
        h = jnp.maximum(h @ p["w2"].T + p["b2"], 0.0)
        h = jnp.maximum(h @ p["w3"].T + p["b3"], 0.0)
        return h @ p["w4"].T + p["b4"]

    expected = ref(x, params)
    assert out.shape == (batch, actions_size)
    assert jnp.allclose(out, expected, atol=1e-5, rtol=1e-5)

    # Also exercise a larger batch to cover the multi-step parallel grid path.
    key, kx2 = jax.random.split(key)
    x_big = jax.random.normal(kx2, (300, state_size), dtype=jnp.float32)
    out_big = jax.block_until_ready(
        dqn_forward(x_big, w_packed, b_packed, actions_size=actions_size))
    assert out_big.shape == (300, actions_size)
    assert jnp.allclose(out_big, ref(x_big, params), atol=1e-5, rtol=1e-5)

    print("KERNEL_OK")
</pallas_src>

<mosaic_0001>
module attributes {stable_mosaic.version = 11 : i64} {
  func.func @dqn_mlp_kernel(%arg0: i32, %arg1: memref<8x128xf32, #tpu.memory_space<vmem>>, %arg2: memref<4x128x128xf32, #tpu.memory_space<vmem>>, %arg3: memref<8x128xf32, #tpu.memory_space<vmem>>, %arg4: memref<8x128xf32, #tpu.memory_space<vmem>>) attributes {dimension_semantics = [#tpu.dimension_semantics<parallel>], iteration_bounds = array<i64: 1>, scalar_prefetch = 0 : i64, scratch_operands = 0 : i64, tpu.core_type = #tpu.core_type<tc>, window_params = [{transform_indices = @transform_0, window_bounds = array<i64: 8, 128>}, {pipeline_mode = #tpu.pipeline_mode<synchronous>, transform_indices = @transform_1, window_bounds = array<i64: 4, 128, 128>}, {pipeline_mode = #tpu.pipeline_mode<synchronous>, transform_indices = @transform_2, window_bounds = array<i64: 8, 128>}, {transform_indices = @transform_3, window_bounds = array<i64: 8, 128>}]} {
    %c0 = arith.constant 0 : index
    %c0_0 = arith.constant 0 : index
    %0 = vector.load %arg1[%c0, %c0_0] : memref<8x128xf32, #tpu.memory_space<vmem>>, vector<8x128xf32>
    %c0_1 = arith.constant 0 : index
    %c0_2 = arith.constant 0 : index
    %c0_3 = arith.constant 0 : index
    %1 = vector.load %arg2[%c0_1, %c0_2, %c0_3] : memref<4x128x128xf32, #tpu.memory_space<vmem>>, vector<1x128x128xf32>
    %2 = vector.shape_cast %1 : vector<1x128x128xf32> to vector<128x128xf32>
    %cst = arith.constant dense<0.000000e+00> : vector<8x128xf32>
    %3 = tpu.matmul %0, %2, %cst {dimension_numbers = #tpu.dot_dimension_numbers<[1], [0], [0], [1], [0, 0, 1, 1], [], []>} : vector<8x128xf32>, vector<128x128xf32>, vector<8x128xf32> -> vector<8x128xf32>
    %c0_4 = arith.constant 0 : index
    %c0_5 = arith.constant 0 : index
    %4 = vector.load %arg3[%c0_4, %c0_5] : memref<8x128xf32, #tpu.memory_space<vmem>>, vector<1x128xf32>
    %5 = vector.shape_cast %4 : vector<1x128xf32> to vector<128xf32>
    %6 = vector.shape_cast %5 : vector<128xf32> to vector<1x128xf32>
    %7 = vector.broadcast %6 : vector<1x128xf32> to vector<8x128xf32>
    %8 = arith.addf %3, %7 : vector<8x128xf32>
    %cst_6 = arith.constant 0.000000e+00 : f32
    %9 = vector.broadcast %cst_6 : f32 to vector<8x128xf32>
    %10 = arith.maximumf %8, %9 : vector<8x128xf32>
    %c1 = arith.constant 1 : index
    %c0_7 = arith.constant 0 : index
    %c0_8 = arith.constant 0 : index
    %11 = vector.load %arg2[%c1, %c0_7, %c0_8] : memref<4x128x128xf32, #tpu.memory_space<vmem>>, vector<1x128x128xf32>
    %12 = vector.shape_cast %11 : vector<1x128x128xf32> to vector<128x128xf32>
    %cst_9 = arith.constant dense<0.000000e+00> : vector<8x128xf32>
    %13 = tpu.matmul %10, %12, %cst_9 {dimension_numbers = #tpu.dot_dimension_numbers<[1], [0], [0], [1], [0, 0, 1, 1], [], []>} : vector<8x128xf32>, vector<128x128xf32>, vector<8x128xf32> -> vector<8x128xf32>
    %c1_10 = arith.constant 1 : index
    %c0_11 = arith.constant 0 : index
    %14 = vector.load %arg3[%c1_10, %c0_11] : memref<8x128xf32, #tpu.memory_space<vmem>>, vector<1x128xf32>
    %15 = vector.shape_cast %14 : vector<1x128xf32> to vector<128xf32>
    %16 = vector.shape_cast %15 : vector<128xf32> to vector<1x128xf32>
    %17 = vector.broadcast %16 : vector<1x128xf32> to vector<8x128xf32>
    %18 = arith.addf %13, %17 : vector<8x128xf32>
    %cst_12 = arith.constant 0.000000e+00 : f32
    %19 = vector.broadcast %cst_12 : f32 to vector<8x128xf32>
    %20 = arith.maximumf %18, %19 : vector<8x128xf32>
    %c2 = arith.constant 2 : index
    %c0_13 = arith.constant 0 : index
    %c0_14 = arith.constant 0 : index
    %21 = vector.load %arg2[%c2, %c0_13, %c0_14] : memref<4x128x128xf32, #tpu.memory_space<vmem>>, vector<1x128x128xf32>
    %22 = vector.shape_cast %21 : vector<1x128x128xf32> to vector<128x128xf32>
    %cst_15 = arith.constant dense<0.000000e+00> : vector<8x128xf32>
    %23 = tpu.matmul %20, %22, %cst_15 {dimension_numbers = #tpu.dot_dimension_numbers<[1], [0], [0], [1], [0, 0, 1, 1], [], []>} : vector<8x128xf32>, vector<128x128xf32>, vector<8x128xf32> -> vector<8x128xf32>
    %c2_16 = arith.constant 2 : index
    %c0_17 = arith.constant 0 : index
    %24 = vector.load %arg3[%c2_16, %c0_17] : memref<8x128xf32, #tpu.memory_space<vmem>>, vector<1x128xf32>
    %25 = vector.shape_cast %24 : vector<1x128xf32> to vector<128xf32>
    %26 = vector.shape_cast %25 : vector<128xf32> to vector<1x128xf32>
    %27 = vector.broadcast %26 : vector<1x128xf32> to vector<8x128xf32>
    %28 = arith.addf %23, %27 : vector<8x128xf32>
    %cst_18 = arith.constant 0.000000e+00 : f32
    %29 = vector.broadcast %cst_18 : f32 to vector<8x128xf32>
    %30 = arith.maximumf %28, %29 : vector<8x128xf32>
    %c3 = arith.constant 3 : index
    %c0_19 = arith.constant 0 : index
    %c0_20 = arith.constant 0 : index
    %31 = vector.load %arg2[%c3, %c0_19, %c0_20] : memref<4x128x128xf32, #tpu.memory_space<vmem>>, vector<1x128x128xf32>
    %32 = vector.shape_cast %31 : vector<1x128x128xf32> to vector<128x128xf32>
    %cst_21 = arith.constant dense<0.000000e+00> : vector<8x128xf32>
    %33 = tpu.matmul %30, %32, %cst_21 {dimension_numbers = #tpu.dot_dimension_numbers<[1], [0], [0], [1], [0, 0, 1, 1], [], []>} : vector<8x128xf32>, vector<128x128xf32>, vector<8x128xf32> -> vector<8x128xf32>
    %c3_22 = arith.constant 3 : index
    %c0_23 = arith.constant 0 : index
    %34 = vector.load %arg3[%c3_22, %c0_23] : memref<8x128xf32, #tpu.memory_space<vmem>>, vector<1x128xf32>
    %35 = vector.shape_cast %34 : vector<1x128xf32> to vector<128xf32>
    %36 = vector.shape_cast %35 : vector<128xf32> to vector<1x128xf32>
    %37 = vector.broadcast %36 : vector<1x128xf32> to vector<8x128xf32>
    %38 = arith.addf %33, %37 : vector<8x128xf32>
    %c0_24 = arith.constant 0 : index
    %c0_25 = arith.constant 0 : index
    %39 = vector.load %arg4[%c0_24, %c0_25] : memref<8x128xf32, #tpu.memory_space<vmem>>, vector<8x128xf32>
    tpu.vector_store %arg4[%c0_24, %c0_25], %38 {strides = array<i32>} : memref<8x128xf32, #tpu.memory_space<vmem>>, vector<8x128xf32>,
    return
  }
  func.func @transform_0(%arg0: i32) -> (i32, i32) {
    %c0_i32 = arith.constant 0 : i32
    %c0_i32_0 = arith.constant 0 : i32
    return %arg0, %c0_i32 : i32, i32
  }
  func.func @transform_1(%arg0: i32) -> (i32, i32, i32) {
    %c0_i32 = arith.constant 0 : i32
    %c0_i32_0 = arith.constant 0 : i32
    %c0_i32_1 = arith.constant 0 : i32
    %c0_i32_2 = arith.constant 0 : i32
    return %c0_i32, %c0_i32_0, %c0_i32_1 : i32, i32, i32
  }
  func.func @transform_2(%arg0: i32) -> (i32, i32) {
    %c0_i32 = arith.constant 0 : i32
    %c0_i32_0 = arith.constant 0 : i32
    %c0_i32_1 = arith.constant 0 : i32
    return %c0_i32, %c0_i32_0 : i32, i32
  }
  func.func @transform_3(%arg0: i32) -> (i32, i32) {
    %c0_i32 = arith.constant 0 : i32
    %c0_i32_0 = arith.constant 0 : i32
    return %arg0, %c0_i32 : i32, i32
  }
}

</mosaic_0001>

<llo_original>
// kernel: dqn_forward.1
$region0: #{dqn_forward.1}
  #allocation0 [shape = 'u32[]', space=smem, size = 0x4, offset = 0x4, fixed_abs, tag = 'smem constant byte address 0x4 - core index']
  #allocation1 [shape = 'u32[144,128]{1,0:T(1,128)}', space=vmem, size = 0x12000, scoped, tag = 'internal scratch']
  %s0 = inlined_call_operand.vmem [shape: f32[8,128], index: 0, kind: input, shape index: {}]
  %s1 = inlined_call_operand.hbm [shape: f32[4,128,128], index: 1, kind: input, shape index: {}]
  %s2 = inlined_call_operand.vmem [shape: f32[8,128], index: 2, kind: input, shape index: {}]
  %s3 = inlined_call_operand.vmem [shape: f32[8,128], index: 3, kind: output, shape index: {}]
  %s4 = sld [smem:[#allocation0]]
  $region26: #{dqn_forward.1} parent=0
    _
  %s6 = ssub.s32 1, %s4
  %s7 = scalar_select 0, %s6, %s4
  $region1: #{dqn_forward.1} parent=0
    #allocation2 [shape = 'u8[262144]{0}', space=vmem, size = 0x40000, scoped, tag = 'input window, operand 1, single buffered']
    #allocation3 [shape = 's32[1]{0}', space=sflag, size = 0x4, scoped, tag = 'scoped memory for dqn_forward.1']
    %8 = vsyncpa [#allocation3], 0
    // Predicated region
    $region2: #{dqn_forward.1} parent=1 // pred_check
      _
    $region3: #{dqn_forward.1} parent=1 // pred_check_branch
      %10 = sbr.rel (0) target = $region5
    $region4: #{dqn_forward.1} parent=1 // pred_region
      _
    $region5: #{dqn_forward.1} parent=1 // pred_fallthru
      _
    // Predicated region
    $region6: #{dqn_forward.1} parent=1 // pred_check
      _
    $region7: #{dqn_forward.1} parent=1 // pred_check_branch
      %12 = sbr.rel (0) target = $region9
    $region8: #{dqn_forward.1} parent=1 // pred_region
      %s14 = ssub.s32 8192, 8192
      %15 = vsyncadd [#allocation3], %s14
      %s16 = sshll.u32 [#allocation2], 4
      %s17 = int_to_ptr.vmem [resolvable:$true] %s16
      %22 = dma.hbm_to_vmem [thread:$0]  %s1, 8192, %s17, [#allocation3], 128, 128, 8
    $region9: #{dqn_forward.1} parent=1 // pred_fallthru
      _
    // Predicated region
    $region10: #{dqn_forward.1} parent=1 // pred_check
      _
    $region11: #{dqn_forward.1} parent=1 // pred_check_branch
      %24 = sbr.rel (0) target = $region13
    $region12: #{dqn_forward.1} parent=1 // pred_region
      _
    $region13: #{dqn_forward.1} parent=1 // pred_fallthru
      _
    // Predicated region
    $region14: #{dqn_forward.1} parent=1 // pred_check
      _
    $region15: #{dqn_forward.1} parent=1 // pred_check_branch
      %26 = sbr.rel (0) target = $region17
    $region16: #{dqn_forward.1} parent=1 // pred_region
      %27 = dma.done [#allocation3], 8192
    $region17: #{dqn_forward.1} parent=1 // pred_fallthru
      _
    %v28 = vld [vmem:[%s0] sm:$0xff]
    %v29 = vld [vmem:[#allocation2] sm:$0xff]
    %v30 = vld [vmem:[#allocation2 + $0x8] sm:$0xff]
    %v31 = vld [vmem:[#allocation2 + $0x10] sm:$0xff]
    %v32 = vld [vmem:[#allocation2 + $0x18] sm:$0xff]
    %v33 = vld [vmem:[#allocation2 + $0x20] sm:$0xff]
    %v34 = vld [vmem:[#allocation2 + $0x28] sm:$0xff]
    %v35 = vld [vmem:[#allocation2 + $0x30] sm:$0xff]
    %v36 = vld [vmem:[#allocation2 + $0x38] sm:$0xff]
    %v37 = vld [vmem:[#allocation2 + $0x40] sm:$0xff]
    %v38 = vld [vmem:[#allocation2 + $0x48] sm:$0xff]
    %v39 = vld [vmem:[#allocation2 + $0x50] sm:$0xff]
    %v40 = vld [vmem:[#allocation2 + $0x58] sm:$0xff]
    %v41 = vld [vmem:[#allocation2 + $0x60] sm:$0xff]
    %v42 = vld [vmem:[#allocation2 + $0x68] sm:$0xff]
    %v43 = vld [vmem:[#allocation2 + $0x70] sm:$0xff]
    %v44 = vld [vmem:[#allocation2 + $0x78] sm:$0xff]
    %v45 = vld [vmem:[%s2] sm:$0x1]
    %v46 = vlaneseq
    %v47 = vshrl.u32 %v46, 7
    %v48 = vsub.s32 0, %v47
    %v49 = vrot.slane %v45, %v48
    %50 = vmatprep.subr.mxu0 0.0
    %51 = vmatpush1.msra.mxu0 %v44
    %52 = vmatprep.subr.mxu0 0.0
    %53 = vmatpush1.msra.mxu0 %v43
    %54 = vmatprep.subr.mxu0 0.0
    %55 = vmatpush1.msra.mxu0 %v42
    %56 = vmatprep.subr.mxu0 0.0
    %57 = vmatpush1.msra.mxu0 %v41
    %58 = vmatprep.subr.mxu0 0.0
    %59 = vmatpush1.msra.mxu0 %v40
    %60 = vmatprep.subr.mxu0 0.0
    %61 = vmatpush1.msra.mxu0 %v39
    %62 = vmatprep.subr.mxu0 0.0
    %63 = vmatpush1.msra.mxu0 %v38
    %64 = vmatprep.subr.mxu0 0.0
    %65 = vmatpush1.msra.mxu0 %v37
    %66 = vmatprep.subr.mxu0 0.0
    %67 = vmatpush1.msra.mxu0 %v36
    %68 = vmatprep.subr.mxu0 0.0
    %69 = vmatpush1.msra.mxu0 %v35
    %70 = vmatprep.subr.mxu0 0.0
    %71 = vmatpush1.msra.mxu0 %v34
    %72 = vmatprep.subr.mxu0 0.0
    %73 = vmatpush1.msra.mxu0 %v33
    %74 = vmatprep.subr.mxu0 0.0
    %75 = vmatpush1.msra.mxu0 %v32
    %76 = vmatprep.subr.mxu0 0.0
    %77 = vmatpush1.msra.mxu0 %v31
    %78 = vmatprep.subr.mxu0 0.0
    %79 = vmatpush1.msra.mxu0 %v30
    %80 = vmatprep.subr.mxu0 0.0
    %81 = vmatpush1.msra.mxu0 %v29
    %82 = vmatprep.subr.mxu0 0.0
    %83 = vmatpush2.msra.mxu0 0.0
    %84 = vmatprep.subr.mxu0 0.0
    %85 = vmatpush2.msra.mxu0 0.0
    %86 = vmatprep.subr.mxu0 0.0
    %87 = vmatpush2.msra.mxu0 0.0
    %88 = vmatprep.subr.mxu0 0.0
    %89 = vmatpush2.msra.mxu0 0.0
    %90 = vmatprep.subr.mxu0 0.0
    %91 = vmatpush2.msra.mxu0 0.0
    %92 = vmatprep.subr.mxu0 0.0
    %93 = vmatpush2.msra.mxu0 0.0
    %94 = vmatprep.subr.mxu0 0.0
    %95 = vmatpush2.msra.mxu0 0.0
    %96 = vmatprep.subr.mxu0 0.0
    %97 = vmatpush2.msra.mxu0 0.0
    %98 = vmatprep.subr.mxu0 0.0
    %99 = vmatpush2.msra.mxu0 0.0
    %100 = vmatprep.subr.mxu0 0.0
    %101 = vmatpush2.msra.mxu0 0.0
    %102 = vmatprep.subr.mxu0 0.0
    %103 = vmatpush2.msra.mxu0 0.0
    %104 = vmatprep.subr.mxu0 0.0
    %105 = vmatpush2.msra.mxu0 0.0
    %106 = vmatprep.subr.mxu0 0.0
    %107 = vmatpush2.msra.mxu0 0.0
    %108 = vmatprep.subr.mxu0 0.0
    %109 = vmatpush2.msra.mxu0 0.0
    %110 = vmatprep.subr.mxu0 0.0
    %111 = vmatpush2.msra.mxu0 0.0
    %112 = vmatprep.subr.mxu0 0.0
    %113 = vmatpush2.msra.mxu0 0.0
    %114 = vmatprep.mubr.f32.mxu0 0.0
    %115 = vmatmul.mubr.f32.gmra.mxu0 %v28
    %v116 = vpop.f32.mrf.mxu0
    %v117 = vadd.f32 %v49, %v116
    %v118 = vpop.f32.mrf.mxu0
    %119 = vdwg.mxu0
    %v120 = vmax.f32 %v117, 0.0
    %s121 = scalar_lea.vmem [#allocation2], 128
    %v122 = vld [vmem:[%s121] sm:$0xff]
    %v123 = vld [vmem:[%s121 + $0x8] sm:$0xff]
    %v124 = vld [vmem:[%s121 + $0x10] sm:$0xff]
    %v125 = vld [vmem:[%s121 + $0x18] sm:$0xff]
    %v126 = vld [vmem:[%s121 + $0x20] sm:$0xff]
    %v127 = vld [vmem:[%s121 + $0x28] sm:$0xff]
    %v128 = vld [vmem:[%s121 + $0x30] sm:$0xff]
    %v129 = vld [vmem:[%s121 + $0x38] sm:$0xff]
    %v130 = vld [vmem:[%s121 + $0x40] sm:$0xff]
    %v131 = vld [vmem:[%s121 + $0x48] sm:$0xff]
    %v132 = vld [vmem:[%s121 + $0x50] sm:$0xff]
    %v133 = vld [vmem:[%s121 + $0x58] sm:$0xff]
    %v134 = vld [vmem:[%s121 + $0x60] sm:$0xff]
    %v135 = vld [vmem:[%s121 + $0x68] sm:$0xff]
    %v136 = vld [vmem:[%s121 + $0x70] sm:$0xff]
    %v137 = vld [vmem:[%s121 + $0x78] sm:$0xff]
    %v138 = vld [vmem:[%s2 + $0x1] sm:$0x1]
    %v139 = vlaneseq
    %v140 = vshrl.u32 %v139, 7
    %v141 = vsub.s32 0, %v140
    %v142 = vrot.slane %v138, %v141
    %143 = vmatprep.subr.mxu0 0.0
    %144 = vmatpush1.msra.mxu0 %v137
    %145 = vmatprep.subr.mxu0 0.0
    %146 = vmatpush1.msra.mxu0 %v136
    %147 = vmatprep.subr.mxu0 0.0
    %148 = vmatpush1.msra.mxu0 %v135
    %149 = vmatprep.subr.mxu0 0.0
    %150 = vmatpush1.msra.mxu0 %v134
    %151 = vmatprep.subr.mxu0 0.0
    %152 = vmatpush1.msra.mxu0 %v133
    %153 = vmatprep.subr.mxu0 0.0
    %154 = vmatpush1.msra.mxu0 %v132
    %155 = vmatprep.subr.mxu0 0.0
    %156 = vmatpush1.msra.mxu0 %v131
    %157 = vmatprep.subr.mxu0 0.0
    %158 = vmatpush1.msra.mxu0 %v130
    %159 = vmatprep.subr.mxu0 0.0
    %160 = vmatpush1.msra.mxu0 %v129
    %161 = vmatprep.subr.mxu0 0.0
    %162 = vmatpush1.msra.mxu0 %v128
    %163 = vmatprep.subr.mxu0 0.0
    %164 = vmatpush1.msra.mxu0 %v127
    %165 = vmatprep.subr.mxu0 0.0
    %166 = vmatpush1.msra.mxu0 %v126
    %167 = vmatprep.subr.mxu0 0.0
    %168 = vmatpush1.msra.mxu0 %v125
    %169 = vmatprep.subr.mxu0 0.0
    %170 = vmatpush1.msra.mxu0 %v124
    %171 = vmatprep.subr.mxu0 0.0
    %172 = vmatpush1.msra.mxu0 %v123
    %173 = vmatprep.subr.mxu0 0.0
    %174 = vmatpush1.msra.mxu0 %v122
    %175 = vmatprep.subr.mxu0 0.0
    %176 = vmatpush2.msra.mxu0 0.0
    %177 = vmatprep.subr.mxu0 0.0
    %178 = vmatpush2.msra.mxu0 0.0
    %179 = vmatprep.subr.mxu0 0.0
    %180 = vmatpush2.msra.mxu0 0.0
    %181 = vmatprep.subr.mxu0 0.0
    %182 = vmatpush2.msra.mxu0 0.0
    %183 = vmatprep.subr.mxu0 0.0
    %184 = vmatpush2.msra.mxu0 0.0
    %185 = vmatprep.subr.mxu0 0.0
    %186 = vmatpush2.msra.mxu0 0.0
    %187 = vmatprep.subr.mxu0 0.0
    %188 = vmatpush2.msra.mxu0 0.0
    %189 = vmatprep.subr.mxu0 0.0
    %190 = vmatpush2.msra.mxu0 0.0
    %191 = vmatprep.subr.mxu0 0.0
    %192 = vmatpush2.msra.mxu0 0.0
    %193 = vmatprep.subr.mxu0 0.0
    %194 = vmatpush2.msra.mxu0 0.0
    %195 = vmatprep.subr.mxu0 0.0
    %196 = vmatpush2.msra.mxu0 0.0
    %197 = vmatprep.subr.mxu0 0.0
    %198 = vmatpush2.msra.mxu0 0.0
    %199 = vmatprep.subr.mxu0 0.0
    %200 = vmatpush2.msra.mxu0 0.0
    %201 = vmatprep.subr.mxu0 0.0
    %202 = vmatpush2.msra.mxu0 0.0
    %203 = vmatprep.subr.mxu0 0.0
    %204 = vmatpush2.msra.mxu0 0.0
    %205 = vmatprep.subr.mxu0 0.0
    %206 = vmatpush2.msra.mxu0 0.0
    %207 = vmatprep.mubr.f32.mxu0 0.0
    %208 = vmatmul.mubr.f32.gmra.mxu0 %v120
    %v209 = vpop.f32.mrf.mxu0
    %v210 = vadd.f32 %v142, %v209
    %v211 = vpop.f32.mrf.mxu0
    %212 = vdwg.mxu0
    %v213 = vmax.f32 %v210, 0.0
    %s214 = scalar_lea.vmem [#allocation2], 256
    %v215 = vld [vmem:[%s214] sm:$0xff]
    %v216 = vld [vmem:[%s214 + $0x8] sm:$0xff]
    %v217 = vld [vmem:[%s214 + $0x10] sm:$0xff]
    %v218 = vld [vmem:[%s214 + $0x18] sm:$0xff]
    %v219 = vld [vmem:[%s214 + $0x20] sm:$0xff]
    %v220 = vld [vmem:[%s214 + $0x28] sm:$0xff]
    %v221 = vld [vmem:[%s214 + $0x30] sm:$0xff]
    %v222 = vld [vmem:[%s214 + $0x38] sm:$0xff]
    %v223 = vld [vmem:[%s214 + $0x40] sm:$0xff]
    %v224 = vld [vmem:[%s214 + $0x48] sm:$0xff]
    %v225 = vld [vmem:[%s214 + $0x50] sm:$0xff]
    %v226 = vld [vmem:[%s214 + $0x58] sm:$0xff]
    %v227 = vld [vmem:[%s214 + $0x60] sm:$0xff]
    %v228 = vld [vmem:[%s214 + $0x68] sm:$0xff]
    %v229 = vld [vmem:[%s214 + $0x70] sm:$0xff]
    %v230 = vld [vmem:[%s214 + $0x78] sm:$0xff]
    %v231 = vld [vmem:[%s2 + $0x2] sm:$0x1]
    %v232 = vlaneseq
    %v233 = vshrl.u32 %v232, 7
    %v234 = vsub.s32 0, %v233
    %v235 = vrot.slane %v231, %v234
    %236 = vmatprep.subr.mxu0 0.0
    %237 = vmatpush1.msra.mxu0 %v230
    %238 = vmatprep.subr.mxu0 0.0
    %239 = vmatpush1.msra.mxu0 %v229
    %240 = vmatprep.subr.mxu0 0.0
    %241 = vmatpush1.msra.mxu0 %v228
    %242 = vmatprep.subr.mxu0 0.0
    %243 = vmatpush1.msra.mxu0 %v227
    %244 = vmatprep.subr.mxu0 0.0
    %245 = vmatpush1.msra.mxu0 %v226
    %246 = vmatprep.subr.mxu0 0.0
    %247 = vmatpush1.msra.mxu0 %v225
    %248 = vmatprep.subr.mxu0 0.0
    %249 = vmatpush1.msra.mxu0 %v224
    %250 = vmatprep.subr.mxu0 0.0
    %251 = vmatpush1.msra.mxu0 %v223
    %252 = vmatprep.subr.mxu0 0.0
    %253 = vmatpush1.msra.mxu0 %v222
    %254 = vmatprep.subr.mxu0 0.0
    %255 = vmatpush1.msra.mxu0 %v221
    %256 = vmatprep.subr.mxu0 0.0
    %257 = vmatpush1.msra.mxu0 %v220
    %258 = vmatprep.subr.mxu0 0.0
    %259 = vmatpush1.msra.mxu0 %v219
    %260 = vmatprep.subr.mxu0 0.0
    %261 = vmatpush1.msra.mxu0 %v218
    %262 = vmatprep.subr.mxu0 0.0
    %263 = vmatpush1.msra.mxu0 %v217
    %264 = vmatprep.subr.mxu0 0.0
    %265 = vmatpush1.msra.mxu0 %v216
    %266 = vmatprep.subr.mxu0 0.0
    %267 = vmatpush1.msra.mxu0 %v215
    %268 = vmatprep.subr.mxu0 0.0
    %269 = vmatpush2.msra.mxu0 0.0
    %270 = vmatprep.subr.mxu0 0.0
    %271 = vmatpush2.msra.mxu0 0.0
    %272 = vmatprep.subr.mxu0 0.0
    %273 = vmatpush2.msra.mxu0 0.0
    %274 = vmatprep.subr.mxu0 0.0
    %275 = vmatpush2.msra.mxu0 0.0
    %276 = vmatprep.subr.mxu0 0.0
    %277 = vmatpush2.msra.mxu0 0.0
    %278 = vmatprep.subr.mxu0 0.0
    %279 = vmatpush2.msra.mxu0 0.0
    %280 = vmatprep.subr.mxu0 0.0
    %281 = vmatpush2.msra.mxu0 0.0
    %282 = vmatprep.subr.mxu0 0.0
    %283 = vmatpush2.msra.mxu0 0.0
    %284 = vmatprep.subr.mxu0 0.0
    %285 = vmatpush2.msra.mxu0 0.0
    %286 = vmatprep.subr.mxu0 0.0
    %287 = vmatpush2.msra.mxu0 0.0
    %288 = vmatprep.subr.mxu0 0.0
    %289 = vmatpush2.msra.mxu0 0.0
    %290 = vmatprep.subr.mxu0 0.0
    %291 = vmatpush2.msra.mxu0 0.0
    %292 = vmatprep.subr.mxu0 0.0
    %293 = vmatpush2.msra.mxu0 0.0
    %294 = vmatprep.subr.mxu0 0.0
    %295 = vmatpush2.msra.mxu0 0.0
    %296 = vmatprep.subr.mxu0 0.0
    %297 = vmatpush2.msra.mxu0 0.0
    %298 = vmatprep.subr.mxu0 0.0
    %299 = vmatpush2.msra.mxu0 0.0
    %300 = vmatprep.mubr.f32.mxu0 0.0
    %301 = vmatmul.mubr.f32.gmra.mxu0 %v213
    %v302 = vpop.f32.mrf.mxu0
    %v303 = vadd.f32 %v235, %v302
    %v304 = vpop.f32.mrf.mxu0
    %305 = vdwg.mxu0
    %v306 = vmax.f32 %v303, 0.0
    %s307 = scalar_lea.vmem [#allocation2], 384
    %v308 = vld [vmem:[%s307] sm:$0xff]
    %v309 = vld [vmem:[%s307 + $0x8] sm:$0xff]
    %v310 = vld [vmem:[%s307 + $0x10] sm:$0xff]
    %v311 = vld [vmem:[%s307 + $0x18] sm:$0xff]
    %v312 = vld [vmem:[%s307 + $0x20] sm:$0xff]
    %v313 = vld [vmem:[%s307 + $0x28] sm:$0xff]
    %v314 = vld [vmem:[%s307 + $0x30] sm:$0xff]
    %v315 = vld [vmem:[%s307 + $0x38] sm:$0xff]
    %v316 = vld [vmem:[%s307 + $0x40] sm:$0xff]
    %v317 = vld [vmem:[%s307 + $0x48] sm:$0xff]
    %v318 = vld [vmem:[%s307 + $0x50] sm:$0xff]
    %v319 = vld [vmem:[%s307 + $0x58] sm:$0xff]
    %v320 = vld [vmem:[%s307 + $0x60] sm:$0xff]
    %v321 = vld [vmem:[%s307 + $0x68] sm:$0xff]
    %v322 = vld [vmem:[%s307 + $0x70] sm:$0xff]
    %v323 = vld [vmem:[%s307 + $0x78] sm:$0xff]
    %v324 = vld [vmem:[%s2 + $0x3] sm:$0x1]
    %v325 = vlaneseq
    %v326 = vshrl.u32 %v325, 7
    %v327 = vsub.s32 0, %v326
    %v328 = vrot.slane %v324, %v327
    %329 = vmatprep.subr.mxu0 0.0
    %330 = vmatpush1.msra.mxu0 %v323
    %331 = vmatprep.subr.mxu0 0.0
    %332 = vmatpush1.msra.mxu0 %v322
    %333 = vmatprep.subr.mxu0 0.0
    %334 = vmatpush1.msra.mxu0 %v321
    %335 = vmatprep.subr.mxu0 0.0
    %336 = vmatpush1.msra.mxu0 %v320
    %337 = vmatprep.subr.mxu0 0.0
    %338 = vmatpush1.msra.mxu0 %v319
    %339 = vmatprep.subr.mxu0 0.0
    %340 = vmatpush1.msra.mxu0 %v318
    %341 = vmatprep.subr.mxu0 0.0
    %342 = vmatpush1.msra.mxu0 %v317
    %343 = vmatprep.subr.mxu0 0.0
    %344 = vmatpush1.msra.mxu0 %v316
    %345 = vmatprep.subr.mxu0 0.0
    %346 = vmatpush1.msra.mxu0 %v315
    %347 = vmatprep.subr.mxu0 0.0
    %348 = vmatpush1.msra.mxu0 %v314
    %349 = vmatprep.subr.mxu0 0.0
    %350 = vmatpush1.msra.mxu0 %v313
    %351 = vmatprep.subr.mxu0 0.0
    %352 = vmatpush1.msra.mxu0 %v312
    %353 = vmatprep.subr.mxu0 0.0
    %354 = vmatpush1.msra.mxu0 %v311
    %355 = vmatprep.subr.mxu0 0.0
    %356 = vmatpush1.msra.mxu0 %v310
    %357 = vmatprep.subr.mxu0 0.0
    %358 = vmatpush1.msra.mxu0 %v309
    %359 = vmatprep.subr.mxu0 0.0
    %360 = vmatpush1.msra.mxu0 %v308
    %361 = vmatprep.subr.mxu0 0.0
    %362 = vmatpush2.msra.mxu0 0.0
    %363 = vmatprep.subr.mxu0 0.0
    %364 = vmatpush2.msra.mxu0 0.0
    %365 = vmatprep.subr.mxu0 0.0
    %366 = vmatpush2.msra.mxu0 0.0
    %367 = vmatprep.subr.mxu0 0.0
    %368 = vmatpush2.msra.mxu0 0.0
    %369 = vmatprep.subr.mxu0 0.0
    %370 = vmatpush2.msra.mxu0 0.0
    %371 = vmatprep.subr.mxu0 0.0
    %372 = vmatpush2.msra.mxu0 0.0
    %373 = vmatprep.subr.mxu0 0.0
    %374 = vmatpush2.msra.mxu0 0.0
    %375 = vmatprep.subr.mxu0 0.0
    %376 = vmatpush2.msra.mxu0 0.0
    %377 = vmatprep.subr.mxu0 0.0
    %378 = vmatpush2.msra.mxu0 0.0
    %379 = vmatprep.subr.mxu0 0.0
    %380 = vmatpush2.msra.mxu0 0.0
    %381 = vmatprep.subr.mxu0 0.0
    %382 = vmatpush2.msra.mxu0 0.0
    %383 = vmatprep.subr.mxu0 0.0
    %384 = vmatpush2.msra.mxu0 0.0
    %385 = vmatprep.subr.mxu0 0.0
    %386 = vmatpush2.msra.mxu0 0.0
    %387 = vmatprep.subr.mxu0 0.0
    %388 = vmatpush2.msra.mxu0 0.0
    %389 = vmatprep.subr.mxu0 0.0
    %390 = vmatpush2.msra.mxu0 0.0
    %391 = vmatprep.subr.mxu0 0.0
    %392 = vmatpush2.msra.mxu0 0.0
    %393 = vmatprep.mubr.f32.mxu0 0.0
    %394 = vmatmul.mubr.f32.gmra.mxu0 %v306
    %v395 = vpop.f32.mrf.mxu0
    %v396 = vadd.f32 %v328, %v395
    %v397 = vpop.f32.mrf.mxu0
    %398 = vdwg.mxu0
    %399 = vst [vmem:[%s3] sm:$0xff] %v396
    // Predicated region
    $region18: #{dqn_forward.1} parent=1 // pred_check
      _
    $region19: #{dqn_forward.1} parent=1 // pred_check_branch
      %401 = sbr.rel (0) target = $region21
    $region20: #{dqn_forward.1} parent=1 // pred_region
      _
    $region21: #{dqn_forward.1} parent=1 // pred_fallthru
      _
    // Predicated region
    $region22: #{dqn_forward.1} parent=1 // pred_check
      _
    $region23: #{dqn_forward.1} parent=1 // pred_check_branch
      %403 = sbr.rel (0) target = $region25
    $region24: #{dqn_forward.1} parent=1 // pred_region
      _
    $region25: #{dqn_forward.1} parent=1 // pred_fallthru
      _
    %404 = vsyncpa [#allocation3], 1

</llo_original>
